<compile_context>
chip_gen: v6e
topology: v6e:2x2x1
jax: 0.10.0
libtpu: 0.0.40
codegen_flags: <defaults>
</compile_context>

<pallas_src>
import math

import jax
import jax.numpy as jnp
from jax.experimental import pallas as pl
from jax.experimental.pallas import tpu as pltpu


def _pos_enc_kernel(x_ref, pos_ref, o_ref):
    # x_ref  : (TS, B, E)  tile of the token embeddings (seq-major)
    # pos_ref: (TS, E)     matching tile of the positional table
    # o_ref  : (B, TS, E)  output tile, already (batch, seq, emb)
    x = x_ref[...]          # single full-tile vector load
    pe = pos_ref[...]       # (TS, E)
    B = x.shape[1]
    # B is a small static constant -> unrolled. Each iteration is a 2-D
    # (TS, E) add (full VPU width) plus a contiguous slab store into the
    # outer dim of the output block (full-width store; no per-lane masking
    # beyond what E itself dictates). The transpose(0, 1) is thus realized
    # purely by where the slabs land in the output block.
    for b in range(B):
        o_ref[b, :, :] = (x[:, b, :] + pe).astype(o_ref.dtype)


def make_pos_embedding(emb_size: int, maxlen: int = 5000, dtype=jnp.float32):
    """Deterministic positional table, identical math to the PyTorch __init__."""
    den = jnp.exp(-jnp.arange(0, emb_size, 2, dtype=jnp.float32)
                  * math.log(10000.0) / emb_size)                 # (ceil(E/2),)
    pos = jnp.arange(0, maxlen, dtype=jnp.float32)[:, None]       # (maxlen, 1)
    sin = jnp.sin(pos * den)
    cos = jnp.cos(pos * den)
    pe = jnp.zeros((maxlen, emb_size), dtype=jnp.float32)
    pe = pe.at[:, 0::2].set(sin[:, : (emb_size + 1) // 2])
    pe = pe.at[:, 1::2].set(cos[:, : emb_size // 2])
    return pe.astype(dtype)                                       # (maxlen, E)


def _choose_tile_s(S, B, E, itemsize, *, max_tile=512, tile_bytes_budget=4 << 20):
    """Largest multiple-of-8 divisor of S whose per-step working set
    (x tile + out tile + pos tile) fits the budget; prefers leaving >=2 grid
    steps so the 2 TensorCores on v7x can both be used."""
    def step_bytes(t):
        return t * (2 * B * E + E) * itemsize

    candidates = [t for t in range(8, min(S, max_tile) + 1, 8)
                  if S % t == 0 and step_bytes(t) <= tile_bytes_budget]
    if not candidates:
        return S                      # full-extent block is always legal
    multi_step = [t for t in candidates if S // t >= 2]
    return max(multi_step) if multi_step else max(candidates)


def positional_encoding(token_embedding, pos_embedding, *, tile_s=None):
    """token_embedding: (S, B, E); pos_embedding: (maxlen, E) -> (B, S, E).

    Equals the PyTorch forward in eval mode:
        dropout(x + pos_embedding[:S]).transpose(0, 1)   (dropout == identity)
    """
    S, B, E = token_embedding.shape
    dtype = token_embedding.dtype
    itemsize = jnp.dtype(dtype).itemsize
    pos = pos_embedding[:S].astype(dtype)          # (S, E) == pos_embedding[:x.size(0)]

    if tile_s is None:
        tile_s = _choose_tile_s(S, B, E, itemsize)
    assert S % tile_s == 0, "seq length must be a multiple of the seq tile"
    grid = (S // tile_s,)

    # Double-buffered working set + headroom; stays well inside v7x's 64 MiB.
    step_bytes = tile_s * (2 * B * E + E) * itemsize
    vmem_limit = int(min(48 << 20, max(16 << 20, 2 * step_bytes + (4 << 20))))

    cost = pl.CostEstimate(
        flops=S * B * E,
        transcendentals=0,
        bytes_accessed=(2 * S * B * E + S * E) * itemsize,
    )

    return pl.pallas_call(
        _pos_enc_kernel,
        out_shape=jax.ShapeDtypeStruct((B, S, E), dtype),
        grid_spec=pltpu.PrefetchScalarGridSpec(
            num_scalar_prefetch=0,
            grid=grid,
            in_specs=[
                pl.BlockSpec((tile_s, B, E), lambda si: (si, 0, 0)),  # x tile
                pl.BlockSpec((tile_s, E), lambda si: (si, 0)),        # pos tile
            ],
            out_specs=pl.BlockSpec((B, tile_s, E), lambda si: (0, si, 0)),
        ),
        compiler_params=pltpu.CompilerParams(
            dimension_semantics=("parallel",),
            vmem_limit_bytes=vmem_limit,
        ),
        cost_estimate=cost,
    )(token_embedding, pos)


if __name__ == "__main__":
    # Small shapes consistent with the module's forward:
    #   S (seq) = 8, B (batch) = 2, E (emb_size) = 32, maxlen = 64
    S, B, E, MAXLEN = 8, 2, 32, 64
    DROPOUT = 0.1  # eval-mode dropout == identity

    key = jax.random.PRNGKey(0)
    token_embedding = jax.random.normal(key, (S, B, E), dtype=jnp.float32)

    pos_embedding = make_pos_embedding(E, MAXLEN)  # deterministic "buffer"

    out = positional_encoding(token_embedding, pos_embedding)
    out = jax.block_until_ready(out)

    # Pure-JAX reference of the PyTorch forward (eval mode):
    ref = jnp.transpose(token_embedding + pos_embedding[:S][:, None, :],
                        (1, 0, 2))
    assert out.shape == (B, S, E)
    assert jnp.allclose(out, ref, atol=1e-6, rtol=1e-6)

    print("KERNEL_OK")
</pallas_src>

<mosaic_0001>
module attributes {stable_mosaic.version = 11 : i64} {
  func.func @_pos_enc_kernel(%arg0: i32, %arg1: memref<8x2x32xf32, #tpu.memory_space<vmem>>, %arg2: memref<8x32xf32, #tpu.memory_space<vmem>>, %arg3: memref<2x8x32xf32, #tpu.memory_space<vmem>>) attributes {dimension_semantics = [#tpu.dimension_semantics<parallel>], iteration_bounds = array<i64: 1>, scalar_prefetch = 0 : i64, scratch_operands = 0 : i64, tpu.core_type = #tpu.core_type<tc>, window_params = [{transform_indices = @transform_0, window_bounds = array<i64: 8, 2, 32>}, {transform_indices = @transform_1, window_bounds = array<i64: 8, 32>}, {transform_indices = @transform_2, window_bounds = array<i64: 2, 8, 32>}]} {
    %c0 = arith.constant 0 : index
    %c0_0 = arith.constant 0 : index
    %c0_1 = arith.constant 0 : index
    %0 = vector.load %arg1[%c0, %c0_0, %c0_1] : memref<8x2x32xf32, #tpu.memory_space<vmem>>, vector<8x2x32xf32>
    %c0_2 = arith.constant 0 : index
    %c0_3 = arith.constant 0 : index
    %1 = vector.load %arg2[%c0_2, %c0_3] : memref<8x32xf32, #tpu.memory_space<vmem>>, vector<8x32xf32>
    %2 = vector.extract_strided_slice %0 {offsets = [0, 0, 0], sizes = [8, 1, 32], strides = [1, 1, 1]} : vector<8x2x32xf32> to vector<8x1x32xf32>
    %3 = vector.shape_cast %2 : vector<8x1x32xf32> to vector<8x32xf32>
    %4 = arith.addf %3, %1 : vector<8x32xf32>
    %c0_4 = arith.constant 0 : index
    %c0_5 = arith.constant 0 : index
    %c0_6 = arith.constant 0 : index
    %5 = vector.load %arg3[%c0_4, %c0_5, %c0_6] : memref<2x8x32xf32, #tpu.memory_space<vmem>>, vector<1x8x32xf32>
    %6 = vector.shape_cast %5 : vector<1x8x32xf32> to vector<8x32xf32>
    %7 = vector.shape_cast %4 : vector<8x32xf32> to vector<1x8x32xf32>
    tpu.vector_store %arg3[%c0_4, %c0_5, %c0_6], %7 {strides = array<i32>} : memref<2x8x32xf32, #tpu.memory_space<vmem>>, vector<1x8x32xf32>,
    %8 = vector.extract_strided_slice %0 {offsets = [0, 1, 0], sizes = [8, 1, 32], strides = [1, 1, 1]} : vector<8x2x32xf32> to vector<8x1x32xf32>
    %9 = vector.shape_cast %8 : vector<8x1x32xf32> to vector<8x32xf32>
    %10 = arith.addf %9, %1 : vector<8x32xf32>
    %c1 = arith.constant 1 : index
    %c0_7 = arith.constant 0 : index
    %c0_8 = arith.constant 0 : index
    %11 = vector.load %arg3[%c1, %c0_7, %c0_8] : memref<2x8x32xf32, #tpu.memory_space<vmem>>, vector<1x8x32xf32>
    %12 = vector.shape_cast %11 : vector<1x8x32xf32> to vector<8x32xf32>
    %13 = vector.shape_cast %10 : vector<8x32xf32> to vector<1x8x32xf32>
    tpu.vector_store %arg3[%c1, %c0_7, %c0_8], %13 {strides = array<i32>} : memref<2x8x32xf32, #tpu.memory_space<vmem>>, vector<1x8x32xf32>,
    return
  }
  func.func @transform_0(%arg0: i32) -> (i32, i32, i32) {
    %c0_i32 = arith.constant 0 : i32
    %c0_i32_0 = arith.constant 0 : i32
    %c0_i32_1 = arith.constant 0 : i32
    return %arg0, %c0_i32, %c0_i32_0 : i32, i32, i32
  }
  func.func @transform_1(%arg0: i32) -> (i32, i32) {
    %c0_i32 = arith.constant 0 : i32
    %c0_i32_0 = arith.constant 0 : i32
    return %arg0, %c0_i32 : i32, i32
  }
  func.func @transform_2(%arg0: i32) -> (i32, i32, i32) {
    %c0_i32 = arith.constant 0 : i32
    %c0_i32_0 = arith.constant 0 : i32
    %c0_i32_1 = arith.constant 0 : i32
    return %c0_i32, %arg0, %c0_i32_0 : i32, i32, i32
  }
}

</mosaic_0001>

<llo_original>
// kernel: tpu_custom_call.1
$region0: #{tpu_custom_call.1}
  #allocation0 [shape = 'u32[]', space=smem, size = 0x4, offset = 0x4, fixed_abs, tag = 'smem constant byte address 0x4 - core index']
  #allocation1 [shape = 'u32[144,128]{1,0:T(1,128)}', space=vmem, size = 0x12000, scoped, tag = 'internal scratch']
  %s0 = inlined_call_operand.hbm [shape: f32[8,2,32], index: 0, kind: input, shape index: {}]
  %s1 = inlined_call_operand.hbm [shape: f32[8,32], index: 1, kind: input, shape index: {}]
  %s2 = inlined_call_operand.hbm [shape: f32[2,8,32], index: 2, kind: output, shape index: {}]
  %s3 = sld [smem:[#allocation0]]
  $region26: #{tpu_custom_call.1} parent=0
    _
  %s5 = ssub.s32 1, %s3
  %s6 = scalar_select 0, %s5, %s3
  $region1: #{tpu_custom_call.1} parent=0
    #allocation2 [shape = 'u8[8192]{0}', space=vmem, size = 0x2000, scoped, tag = 'input window, operand 0, single buffered']
    #allocation3 [shape = 's32[1]{0}', space=sflag, size = 0x4, scoped, tag = 'scoped memory for tpu_custom_call.1']
    #allocation4 [shape = 's32[1]{0}', space=sflag, size = 0x4, scoped, tag = 'scoped memory for tpu_custom_call.1']
    #allocation5 [shape = 'u8[4096]{0}', space=vmem, size = 0x1000, scoped, tag = 'input window, operand 1, single buffered']
    #allocation6 [shape = 's32[1]{0}', space=sflag, size = 0x4, scoped, tag = 'scoped memory for tpu_custom_call.1']
    #allocation7 [shape = 'u8[8192]{0}', space=vmem, size = 0x2000, scoped, tag = 'output window, operand 0, single buffered']
    %7 = vsyncpa [#allocation3], 0
    %8 = vsyncpa [#allocation6], 0
    %9 = vsyncpa [#allocation4], 0
    // Predicated region
    $region2: #{tpu_custom_call.1} parent=1 // pred_check
      _
    $region3: #{tpu_custom_call.1} parent=1 // pred_check_branch
      %11 = sbr.rel (0) target = $region5
    $region4: #{tpu_custom_call.1} parent=1 // pred_region
      %s13 = ssub.s32 256, 256
      %14 = vsyncadd [#allocation3], %s13
      %s15 = sshll.u32 [#allocation2], 4
      %s16 = int_to_ptr.vmem [resolvable:$true] %s15
      %21 = dma.hbm_to_vmem [thread:$0]  %s0, 256, %s16, [#allocation3], 32, 32, 2
    $region5: #{tpu_custom_call.1} parent=1 // pred_fallthru
      _
    // Predicated region
    $region6: #{tpu_custom_call.1} parent=1 // pred_check
      _
    $region7: #{tpu_custom_call.1} parent=1 // pred_check_branch
      %23 = sbr.rel (0) target = $region9
    $region8: #{tpu_custom_call.1} parent=1 // pred_region
      %s25 = ssub.s32 128, 128
      %26 = vsyncadd [#allocation6], %s25
      %s28 = sshll.u32 [#allocation5], 4
      %s29 = int_to_ptr.vmem [resolvable:$true] %s28
      %31 = dma.hbm_to_vmem [thread:$0]  %s1, 128, %s29, [#allocation6]
    $region9: #{tpu_custom_call.1} parent=1 // pred_fallthru
      _
    // Predicated region
    $region10: #{tpu_custom_call.1} parent=1 // pred_check
      _
    $region11: #{tpu_custom_call.1} parent=1 // pred_check_branch
      %33 = sbr.rel (0) target = $region13
    $region12: #{tpu_custom_call.1} parent=1 // pred_region
      %34 = dma.done [#allocation3], 256
    $region13: #{tpu_custom_call.1} parent=1 // pred_fallthru
      _
    // Predicated region
    $region14: #{tpu_custom_call.1} parent=1 // pred_check
      _
    $region15: #{tpu_custom_call.1} parent=1 // pred_check_branch
      %36 = sbr.rel (0) target = $region17
    $region16: #{tpu_custom_call.1} parent=1 // pred_region
      %37 = dma.done [#allocation6], 128
    $region17: #{tpu_custom_call.1} parent=1 // pred_fallthru
      _
    %v38 = vld [vmem:[#allocation2] sm:$0x3]
    %v39 = vld [vmem:[#allocation2 + $0x2] sm:$0x3]
    %v40 = vld [vmem:[#allocation2 + $0x4] sm:$0x3]
    %v41 = vld [vmem:[#allocation2 + $0x6] sm:$0x3]
    %v42 = vld [vmem:[#allocation2 + $0x8] sm:$0x3]
    %v43 = vld [vmem:[#allocation2 + $0xa] sm:$0x3]
    %v44 = vld [vmem:[#allocation2 + $0xc] sm:$0x3]
    %v45 = vld [vmem:[#allocation2 + $0xe] sm:$0x3]
    %v46 = vld [vmem:[#allocation5] sm:$0xff]
    %v48 = vrot.slane %v46, 1
    %v49 = vrot.slane %v46, 2
    %v50 = vrot.slane %v46, 3
    %v51 = vrot.slane %v46, 4
    %v52 = vrot.slane %v46, 5
    %v53 = vrot.slane %v46, 6
    %v54 = vrot.slane %v46, 7
    %v63 = vadd.f32 %v38, %v46
    %v64 = vadd.f32 %v39, %v48
    %v65 = vadd.f32 %v40, %v49
    %v66 = vadd.f32 %v41, %v50
    %v67 = vadd.f32 %v42, %v51
    %v68 = vadd.f32 %v43, %v52
    %v69 = vadd.f32 %v44, %v53
    %v70 = vadd.f32 %v45, %v54
    %v79 = vrot.slane %v64, 7
    %vm80 = vcmask 1041409
    %v81 = vsel %vm80, %v79, %v63
    %v82 = vrot.slane %v65, 6
    %vm83 = vcmask 1042434
    %v84 = vsel %vm83, %v82, %v81
    %v85 = vrot.slane %v66, 5
    %vm86 = vcmask 1043459
    %v87 = vsel %vm86, %v85, %v84
    %v88 = vrot.slane %v67, 4
    %vm89 = vcmask 1044484
    %v90 = vsel %vm89, %v88, %v87
    %v91 = vrot.slane %v68, 3
    %vm92 = vcmask 1045509
    %v93 = vsel %vm92, %v91, %v90
    %v94 = vrot.slane %v69, 2
    %vm95 = vcmask 1046534
    %v96 = vsel %vm95, %v94, %v93
    %v97 = vrot.slane %v70, 1
    %vm98 = vcmask 1047559
    %v99 = vsel %vm98, %v97, %v96
    %vm101 = vcmask 261120
    %102 = vst.msk [vmem:[#allocation7] sm:$0xff] %vm101, %v99
    %v103 = vadd.f32 %v38, %v54
    %v104 = vadd.f32 %v39, %v46
    %v105 = vadd.f32 %v40, %v48
    %v106 = vadd.f32 %v41, %v49
    %v107 = vadd.f32 %v42, %v50
    %v108 = vadd.f32 %v43, %v51
    %v109 = vadd.f32 %v44, %v52
    %v110 = vadd.f32 %v45, %v53
    %v119 = vrot.slane %v104, 7
    %v120 = vsel %vm83, %v119, %v103
    %v121 = vrot.slane %v105, 6
    %v122 = vsel %vm86, %v121, %v120
    %v123 = vrot.slane %v106, 5
    %v124 = vsel %vm89, %v123, %v122
    %v125 = vrot.slane %v107, 4
    %v126 = vsel %vm92, %v125, %v124
    %v127 = vrot.slane %v108, 3
    %v128 = vsel %vm95, %v127, %v126
    %v129 = vrot.slane %v109, 2
    %v130 = vsel %vm98, %v129, %v128
    %v131 = vrot.slane %v110, 1
    %s134 = scalar_lea.vmem [#allocation7], 8
    %vm135 = vcmask 261121
    %136 = vst.msk [vmem:[%s134 - $0x1] sm:$0xfe] %vm135, %v130
    %vm137 = vcmask 253952
    %138 = vst.msk [vmem:[%s134 + $0x7] sm:$0x1] %vm137, %v131
    // Predicated region
    $region18: #{tpu_custom_call.1} parent=1 // pred_check
      _
    $region19: #{tpu_custom_call.1} parent=1 // pred_check_branch
      %140 = sbr.rel (0) target = $region21
    $region20: #{tpu_custom_call.1} parent=1 // pred_region
      %s142 = ssub.s32 256, 256
      %143 = vsyncadd [#allocation4], %s142
      %s144 = sshll.u32 [#allocation7], 4
      %s145 = int_to_ptr.vmem [resolvable:$true] %s144
      %150 = dma.vmem_to_hbm [thread:$0]  %s145, 256, %s2, [#allocation4], 128, 128, 8
    $region21: #{tpu_custom_call.1} parent=1 // pred_fallthru
      _
    // Predicated region
    $region22: #{tpu_custom_call.1} parent=1 // pred_check
      _
    $region23: #{tpu_custom_call.1} parent=1 // pred_check_branch
      %152 = sbr.rel (0) target = $region25
    $region24: #{tpu_custom_call.1} parent=1 // pred_region
      %153 = dma.done [#allocation4], 256
    $region25: #{tpu_custom_call.1} parent=1 // pred_fallthru
      _
    %154 = vsyncpa [#allocation3], 1
    %155 = vsyncpa [#allocation6], 1
    %156 = vsyncpa [#allocation4], 1

</llo_original>
